<compile_context>
chip_gen: v7x
topology: tpu7x:2x2x1
jax: 0.10.0
libtpu: 0.0.40
codegen_flags: <defaults>
</compile_context>

<pallas_src>
import functools

import numpy as np
import jax
import jax.numpy as jnp
from jax.experimental import pallas as pl
from jax.experimental.pallas import tpu as pltpu


def _round_up(v, m):
    return ((v + m - 1) // m) * m


def _maxmin_pool_kernel(x_ref, y_ref, *scratch, kernel_size, stride, padding,
                        dilation, pad_value, is_min, use_strided_h,
                        H, W, Hs, Ws, Wl, Ho, Wo, lb, need_stage):
    """Pool one planes-last slab of `lb` planes (planes on the 128-lane axis).

    x_ref : (H,  W,  lb)       unpadded input slab
    y_ref : (Ho, Wo, lb)       pooled output slab
    scratch (allocated only when needed):
      pad_ref : (Hs, Ws, lb)   staging slab (padding > 0 or fallback extra rows)
      tmp_ref : (Ho, Wsrc, lb) row-reduced intermediate (stride > 1 only)
    """
    op = jnp.minimum if is_min else jnp.maximum
    dt = x_ref.dtype

    idx = 0
    pad_ref = None
    tmp_ref = None
    if need_stage:
        pad_ref = scratch[idx]
        idx += 1
    if stride > 1:
        tmp_ref = scratch[idx]
        idx += 1

    if need_stage:
        # Border-only constant fill, then the interior copy at a sublane-aligned
        # column offset (Wl is a multiple of 8) -> unmasked vst for the big store.
        if padding > 0:
            pad_ref[pl.ds(0, padding), :, :] = jnp.full((padding, Ws, lb), pad_value, dt)
        n_bot = Hs - padding - H
        if n_bot > 0:
            pad_ref[pl.ds(padding + H, n_bot), :, :] = jnp.full((n_bot, Ws, lb), pad_value, dt)
        if Wl > 0:
            pad_ref[pl.ds(padding, H), pl.ds(0, Wl), :] = jnp.full((H, Wl, lb), pad_value, dt)
        w_r = Ws - Wl - W
        if w_r > 0:
            pad_ref[pl.ds(padding, H), pl.ds(Wl + W, w_r), :] = jnp.full((H, w_r, lb), pad_value, dt)
        pad_ref[pl.ds(padding, H), pl.ds(Wl, W), :] = x_ref[...]
        src = pad_ref
        wsrc = Ws
    else:
        src = x_ref
        wsrc = W
    col0 = Wl - padding  # source column holding padded-image column 0

    # ---- row pass: racc[oh, w] = op_ki src[oh*stride + ki*dilation, w] ------
    def row_slab(ki):
        start = ki * dilation
        if stride == 1:
            return src[pl.ds(start, Ho), :, :]
        if use_strided_h:
            # Leading-dim strided load: pure addressing, no stride-x over-read.
            return src[pl.ds(start, Ho, stride=stride), :, :]
        # Fallback: contiguous over-read + reshape subsample (Hs is padded so
        # the load never goes out of bounds; extra rows are never selected).
        v = src[pl.ds(start, Ho * stride), :, :]
        return v.reshape(Ho, stride, wsrc, lb)[:, 0]

    acc = row_slab(0)
    for ki in range(1, kernel_size):
        acc = op(acc, row_slab(ki))

    # ---- column pass: y[oh, ow] = op_kj racc[oh, col0 + ow*stride + kj*d] ---
    if stride == 1:
        # In-register: static sublane slices of the row-reduced value; skips
        # the tmp_ref store + kernel_size reloads entirely.
        out = None
        for kj in range(kernel_size):
            c = col0 + kj * dilation
            part = acc[:, c:c + Wo, :]
            out = part if out is None else op(out, part)
    else:
        tmp_ref[...] = acc
        out = None
        for kj in range(kernel_size):
            c = col0 + kj * dilation
            part = tmp_ref[:, pl.ds(c, Wo, stride=stride), :]
            out = part if out is None else op(out, part)

    y_ref[...] = out.astype(y_ref.dtype)


def _physical_vmem_bytes():
    try:
        info = pltpu.get_tpu_info()
        for name in ("vmem_capacity_bytes", "vmem_bytes", "vmem_size_bytes"):
            v = getattr(info, name, None)
            if v:
                return int(v)
    except Exception:
        pass
    return 64 << 20  # conservative default (v7x-sized)


def _pick_lane_block(nc, elems_per_lane, itemsize, budget_bytes):
    """Largest lane block (multiple of 128 dividing nc) fitting the budget,
    keeping >= 2 grid steps when possible (v7x megacore)."""
    if nc % 128 != 0:
        return nc  # BlockSpec: last dim must be a 128-multiple or the full dim
    per_lane = max(1, elems_per_lane * itemsize)
    max_lanes = max(128, budget_bytes // per_lane)
    lb = 128
    while nc % (lb * 2) == 0 and lb * 2 <= max_lanes:
        lb *= 2
    while nc // lb < 2 and lb >= 256:
        lb //= 2
    return lb


def _pool_planes_last(xcl, *, kernel_size, stride, padding, dilation,
                      pad_value, is_min, use_strided_h):
    """Core call on a (H, W, P) planes-last array (P = N*C on the lane axis)."""
    H, W, P = xcl.shape
    Hp, Wp = H + 2 * padding, W + 2 * padding
    eff_k = dilation * (kernel_size - 1) + 1
    Ho = (Hp - eff_k) // stride + 1
    Wo = (Wp - eff_k) // stride + 1

    if use_strided_h or stride == 1:
        Hs = Hp
    else:  # reshape fallback needs room for Ho*stride contiguous rows
        Hs = max(Hp, (kernel_size - 1) * dilation + Ho * stride)
    need_stage = (padding > 0) or (Hs > H)
    Wl = _round_up(padding, 8) if padding > 0 else 0
    Ws = Wl + W + padding
    wsrc = Ws if need_stage else W

    itemsize = np.dtype(xcl.dtype).itemsize
    elems_per_lane = 2 * H * W + 2 * Ho * Wo          # double-buffered in/out
    if need_stage:
        elems_per_lane += Hs * Ws
    if stride > 1:
        elems_per_lane += Ho * wsrc

    phys = _physical_vmem_bytes()
    budget = max(8 << 20, phys // 5)                  # per-step working-set budget
    lb = _pick_lane_block(P, elems_per_lane, itemsize, budget)
    grid = (P // lb,)
    needed = elems_per_lane * lb * itemsize
    vmem_limit = int(min(128 << 20, max(32 << 20, needed + (4 << 20))))

    scratch = []
    if need_stage:
        scratch.append(pltpu.VMEM((Hs, Ws, lb), xcl.dtype))
    if stride > 1:
        scratch.append(pltpu.VMEM((Ho, wsrc, lb), xcl.dtype))

    kernel = functools.partial(
        _maxmin_pool_kernel, kernel_size=kernel_size, stride=stride,
        padding=padding, dilation=dilation, pad_value=float(pad_value),
        is_min=is_min, use_strided_h=use_strided_h,
        H=H, W=W, Hs=Hs, Ws=Ws, Wl=Wl, Ho=Ho, Wo=Wo, lb=lb,
        need_stage=need_stage)

    cost = pl.CostEstimate(
        flops=int(max(0, kernel_size - 1) * (Ho * wsrc + Ho * Wo) * P),
        transcendentals=0,
        bytes_accessed=int((H * W + Ho * Wo) * P * itemsize))

    return pl.pallas_call(
        kernel,
        out_shape=jax.ShapeDtypeStruct((Ho, Wo, P), xcl.dtype),
        grid=grid,
        in_specs=[pl.BlockSpec((H, W, lb), lambda i: (0, 0, i))],
        out_specs=pl.BlockSpec((Ho, Wo, lb), lambda i: (0, 0, i)),
        scratch_shapes=scratch,
        compiler_params=pltpu.CompilerParams(
            dimension_semantics=("parallel",),
            vmem_limit_bytes=vmem_limit),
        cost_estimate=cost,
    )(xcl)


def maxmin_pool2d(x, sign, *, kernel_size, max_time, stride=None, padding=0,
                  dilation=1):
    """Forward of MaxMinPool2D on an NCHW input.

    `sign` is the module's fixed, non-trainable (1,1,1,1) parameter and must be
    a concrete (non-traced) value: the kernel specializes on it at trace time
    (min-pool for sign<0, max-pool otherwise) and rescales by sign**2, which
    equals  sign * max_pool2d(sign * pad(x, max_time))  exactly.
    """
    if stride is None:
        stride = kernel_size
    N, C, H, W = x.shape
    NC = N * C

    s = float(np.asarray(jax.device_get(sign)).reshape(()))
    is_min = s < 0.0
    scale = s * s

    # Layout plumbing: N*C planes onto the 128-lane axis (HBM transposes; see
    # TODO(synk) at the top about running the surrounding model planes-last).
    xcl = jnp.transpose(x, (2, 3, 0, 1)).reshape(H, W, NC)

    kwargs = dict(kernel_size=kernel_size, stride=stride, padding=padding,
                  dilation=dilation, pad_value=float(max_time), is_min=is_min)
    try:
        out_cl = _pool_planes_last(xcl, use_strided_h=True, **kwargs)
        out_cl = jax.block_until_ready(out_cl)
    except Exception:
        # Proven fallback if the leading-dim strided load does not lower.
        out_cl = _pool_planes_last(xcl, use_strided_h=False, **kwargs)

    Ho, Wo = out_cl.shape[0], out_cl.shape[1]
    out = jnp.transpose(out_cl.reshape(Ho, Wo, N, C), (2, 3, 0, 1))
    if scale != 1.0:
        out = out * jnp.asarray(scale, out.dtype)
    return out


def _reference(x, sign, *, kernel_size, max_time, stride=None, padding=0,
               dilation=1):
    """Pure-numpy reference mirroring the PyTorch forward."""
    if stride is None:
        stride = kernel_size
    x = np.asarray(x, np.float32)
    s = float(np.asarray(sign).reshape(()))
    N, C, H, W = x.shape
    xp = np.pad(x, ((0, 0), (0, 0), (padding, padding), (padding, padding)),
                mode="constant", constant_values=max_time)
    Hp, Wp = xp.shape[2], xp.shape[3]
    eff = dilation * (kernel_size - 1) + 1
    Ho = (Hp - eff) // stride + 1
    Wo = (Wp - eff) // stride + 1
    out = np.empty((N, C, Ho, Wo), np.float32)
    for i in range(Ho):
        for j in range(Wo):
            win = xp[:, :,
                     i * stride:i * stride + eff:dilation,
                     j * stride:j * stride + eff:dilation]
            out[:, :, i, j] = s * np.max(s * win, axis=(2, 3))
    return out


if __name__ == "__main__":
    key = jax.random.PRNGKey(0)
    # Small shapes consistent with the module: NCHW spike-time maps in [0, max_time].
    max_time = 4.0
    x = jax.random.uniform(key, (2, 4, 16, 16), dtype=jnp.float32,
                           minval=0.0, maxval=max_time)
    # nn.Parameter(-1 * torch.ones(1, 1, 1, 1)) -> fixed sign = -1 (min pool);
    # also exercise sign = +1 (max pool).
    sign_min = jnp.full((1, 1, 1, 1), -1.0, dtype=jnp.float32)
    sign_max = jnp.full((1, 1, 1, 1), 1.0, dtype=jnp.float32)

    cases = [
        (sign_min, dict(kernel_size=2, stride=2, padding=1, dilation=1)),
        (sign_min, dict(kernel_size=3, stride=1, padding=0, dilation=2)),
        (sign_max, dict(kernel_size=2, stride=2, padding=1, dilation=1)),
    ]
    for sgn, cfg in cases:
        out = maxmin_pool2d(x, sgn, max_time=max_time, **cfg)
        out = jax.block_until_ready(out)
        ref = _reference(np.asarray(x), np.asarray(sgn), max_time=max_time, **cfg)
        assert out.shape == ref.shape, (out.shape, ref.shape)
        np.testing.assert_allclose(np.asarray(out), ref, rtol=1e-6, atol=1e-6)

    print("KERNEL_OK")
</pallas_src>

<mosaic_0001>
module attributes {stable_mosaic.version = 11 : i64} {
  func.func @_maxmin_pool_kernel(%arg0: i32, %arg1: memref<16x16x8xf32, #tpu.memory_space<vmem>>, %arg2: memref<9x9x8xf32, #tpu.memory_space<vmem>>, %arg3: memref<18x25x8xf32, #tpu.memory_space<vmem>>, %arg4: memref<9x25x8xf32, #tpu.memory_space<vmem>>) attributes {dimension_semantics = [#tpu.dimension_semantics<parallel>], iteration_bounds = array<i64: 1>, scalar_prefetch = 0 : i64, scratch_operands = 2 : i64, tpu.core_type = #tpu.core_type<tc>, window_params = [{transform_indices = @transform_0, window_bounds = array<i64: 16, 16, 8>}, {transform_indices = @transform_1, window_bounds = array<i64: 9, 9, 8>}]} {
    %cst = arith.constant 4.000000e+00 : f32
    %0 = vector.broadcast %cst : f32 to vector<1x25x8xf32>
    %c0 = arith.constant 0 : index
    %c0_0 = arith.constant 0 : index
    %c0_1 = arith.constant 0 : index
    %1 = vector.load %arg3[%c0, %c0_0, %c0_1] : memref<18x25x8xf32, #tpu.memory_space<vmem>>, vector<1x25x8xf32>
    tpu.vector_store %arg3[%c0, %c0_0, %c0_1], %0 {strides = array<i32>} : memref<18x25x8xf32, #tpu.memory_space<vmem>>, vector<1x25x8xf32>,
    %cst_2 = arith.constant 4.000000e+00 : f32
    %2 = vector.broadcast %cst_2 : f32 to vector<1x25x8xf32>
    %c17 = arith.constant 17 : index
    %c0_3 = arith.constant 0 : index
    %c0_4 = arith.constant 0 : index
    %3 = vector.load %arg3[%c17, %c0_3, %c0_4] : memref<18x25x8xf32, #tpu.memory_space<vmem>>, vector<1x25x8xf32>
    tpu.vector_store %arg3[%c17, %c0_3, %c0_4], %2 {strides = array<i32>} : memref<18x25x8xf32, #tpu.memory_space<vmem>>, vector<1x25x8xf32>,
    %cst_5 = arith.constant 4.000000e+00 : f32
    %4 = vector.broadcast %cst_5 : f32 to vector<16x8x8xf32>
    %c1 = arith.constant 1 : index
    %c0_6 = arith.constant 0 : index
    %c0_7 = arith.constant 0 : index
    %5 = vector.load %arg3[%c1, %c0_6, %c0_7] : memref<18x25x8xf32, #tpu.memory_space<vmem>>, vector<16x8x8xf32>
    tpu.vector_store %arg3[%c1, %c0_6, %c0_7], %4 {strides = array<i32>} : memref<18x25x8xf32, #tpu.memory_space<vmem>>, vector<16x8x8xf32>,
    %cst_8 = arith.constant 4.000000e+00 : f32
    %6 = vector.broadcast %cst_8 : f32 to vector<16x1x8xf32>
    %c1_9 = arith.constant 1 : index
    %c24 = arith.constant 24 : index
    %c0_10 = arith.constant 0 : index
    %7 = vector.load %arg3[%c1_9, %c24, %c0_10] : memref<18x25x8xf32, #tpu.memory_space<vmem>>, vector<16x1x8xf32>
    tpu.vector_store %arg3[%c1_9, %c24, %c0_10], %6 {strides = array<i32>} : memref<18x25x8xf32, #tpu.memory_space<vmem>>, vector<16x1x8xf32>,
    %c0_11 = arith.constant 0 : index
    %c0_12 = arith.constant 0 : index
    %c0_13 = arith.constant 0 : index
    %8 = vector.load %arg1[%c0_11, %c0_12, %c0_13] : memref<16x16x8xf32, #tpu.memory_space<vmem>>, vector<16x16x8xf32>
    %c1_14 = arith.constant 1 : index
    %c8 = arith.constant 8 : index
    %c0_15 = arith.constant 0 : index
    %9 = vector.load %arg3[%c1_14, %c8, %c0_15] : memref<18x25x8xf32, #tpu.memory_space<vmem>>, vector<16x16x8xf32>
    tpu.vector_store %arg3[%c1_14, %c8, %c0_15], %8 {strides = array<i32>} : memref<18x25x8xf32, #tpu.memory_space<vmem>>, vector<16x16x8xf32>,
    %c0_16 = arith.constant 0 : index
    %c0_17 = arith.constant 0 : index
    %c0_18 = arith.constant 0 : index
    %10 = tpu.strided_load %arg3[%c0_16, %c0_17, %c0_18] {strides = array<i32: 2, 1, 1>} : memref<18x25x8xf32, #tpu.memory_space<vmem>>, vector<9x25x8xf32>
    %c1_19 = arith.constant 1 : index
    %c0_20 = arith.constant 0 : index
    %c0_21 = arith.constant 0 : index
    %11 = tpu.strided_load %arg3[%c1_19, %c0_20, %c0_21] {strides = array<i32: 2, 1, 1>} : memref<18x25x8xf32, #tpu.memory_space<vmem>>, vector<9x25x8xf32>
    %12 = arith.minimumf %10, %11 : vector<9x25x8xf32>
    %c0_22 = arith.constant 0 : index
    %c0_23 = arith.constant 0 : index
    %c0_24 = arith.constant 0 : index
    %13 = vector.load %arg4[%c0_22, %c0_23, %c0_24] : memref<9x25x8xf32, #tpu.memory_space<vmem>>, vector<9x25x8xf32>
    tpu.vector_store %arg4[%c0_22, %c0_23, %c0_24], %12 {strides = array<i32>} : memref<9x25x8xf32, #tpu.memory_space<vmem>>, vector<9x25x8xf32>,
    %c0_25 = arith.constant 0 : index
    %c7 = arith.constant 7 : index
    %c0_26 = arith.constant 0 : index
    %14 = tpu.strided_load %arg4[%c0_25, %c7, %c0_26] {strides = array<i32: 1, 2, 1>} : memref<9x25x8xf32, #tpu.memory_space<vmem>>, vector<9x9x8xf32>
    %c0_27 = arith.constant 0 : index
    %c8_28 = arith.constant 8 : index
    %c0_29 = arith.constant 0 : index
    %15 = tpu.strided_load %arg4[%c0_27, %c8_28, %c0_29] {strides = array<i32: 1, 2, 1>} : memref<9x25x8xf32, #tpu.memory_space<vmem>>, vector<9x9x8xf32>
    %16 = arith.minimumf %14, %15 : vector<9x9x8xf32>
    %c0_30 = arith.constant 0 : index
    %c0_31 = arith.constant 0 : index
    %c0_32 = arith.constant 0 : index
    %17 = vector.load %arg2[%c0_30, %c0_31, %c0_32] : memref<9x9x8xf32, #tpu.memory_space<vmem>>, vector<9x9x8xf32>
    tpu.vector_store %arg2[%c0_30, %c0_31, %c0_32], %16 {strides = array<i32>} : memref<9x9x8xf32, #tpu.memory_space<vmem>>, vector<9x9x8xf32>,
    return
  }
  func.func @transform_0(%arg0: i32) -> (i32, i32, i32) {
    %c0_i32 = arith.constant 0 : i32
    %c0_i32_0 = arith.constant 0 : i32
    %c0_i32_1 = arith.constant 0 : i32
    return %c0_i32, %c0_i32_0, %arg0 : i32, i32, i32
  }
  func.func @transform_1(%arg0: i32) -> (i32, i32, i32) {
    %c0_i32 = arith.constant 0 : i32
    %c0_i32_0 = arith.constant 0 : i32
    %c0_i32_1 = arith.constant 0 : i32
    return %c0_i32, %c0_i32_0, %arg0 : i32, i32, i32
  }
}

module attributes {stable_mosaic.version = 11 : i64} {
  func.func @_maxmin_pool_kernel(%arg0: i32, %arg1: memref<16x16x8xf32, #tpu.memory_space<vmem>>, %arg2: memref<9x9x8xf32, #tpu.memory_space<vmem>>, %arg3: memref<19x25x8xf32, #tpu.memory_space<vmem>>, %arg4: memref<9x25x8xf32, #tpu.memory_space<vmem>>) attributes {dimension_semantics = [#tpu.dimension_semantics<parallel>], iteration_bounds = array<i64: 1>, scalar_prefetch = 0 : i64, scratch_operands = 2 : i64, tpu.core_type = #tpu.core_type<tc>, window_params = [{transform_indices = @transform_0, window_bounds = array<i64: 16, 16, 8>}, {transform_indices = @transform_1, window_bounds = array<i64: 9, 9, 8>}]} {
    %cst = arith.constant 4.000000e+00 : f32
    %0 = vector.broadcast %cst : f32 to vector<1x25x8xf32>
    %c0 = arith.constant 0 : index
    %c0_0 = arith.constant 0 : index
    %c0_1 = arith.constant 0 : index
    %1 = vector.load %arg3[%c0, %c0_0, %c0_1] : memref<19x25x8xf32, #tpu.memory_space<vmem>>, vector<1x25x8xf32>
    tpu.vector_store %arg3[%c0, %c0_0, %c0_1], %0 {strides = array<i32>} : memref<19x25x8xf32, #tpu.memory_space<vmem>>, vector<1x25x8xf32>,
    %cst_2 = arith.constant 4.000000e+00 : f32
    %2 = vector.broadcast %cst_2 : f32 to vector<2x25x8xf32>
    %c17 = arith.constant 17 : index
    %c0_3 = arith.constant 0 : index
    %c0_4 = arith.constant 0 : index
    %3 = vector.load %arg3[%c17, %c0_3, %c0_4] : memref<19x25x8xf32, #tpu.memory_space<vmem>>, vector<2x25x8xf32>
    tpu.vector_store %arg3[%c17, %c0_3, %c0_4], %2 {strides = array<i32>} : memref<19x25x8xf32, #tpu.memory_space<vmem>>, vector<2x25x8xf32>,
    %cst_5 = arith.constant 4.000000e+00 : f32
    %4 = vector.broadcast %cst_5 : f32 to vector<16x8x8xf32>
    %c1 = arith.constant 1 : index
    %c0_6 = arith.constant 0 : index
    %c0_7 = arith.constant 0 : index
    %5 = vector.load %arg3[%c1, %c0_6, %c0_7] : memref<19x25x8xf32, #tpu.memory_space<vmem>>, vector<16x8x8xf32>
    tpu.vector_store %arg3[%c1, %c0_6, %c0_7], %4 {strides = array<i32>} : memref<19x25x8xf32, #tpu.memory_space<vmem>>, vector<16x8x8xf32>,
    %cst_8 = arith.constant 4.000000e+00 : f32
    %6 = vector.broadcast %cst_8 : f32 to vector<16x1x8xf32>
    %c1_9 = arith.constant 1 : index
    %c24 = arith.constant 24 : index
    %c0_10 = arith.constant 0 : index
    %7 = vector.load %arg3[%c1_9, %c24, %c0_10] : memref<19x25x8xf32, #tpu.memory_space<vmem>>, vector<16x1x8xf32>
    tpu.vector_store %arg3[%c1_9, %c24, %c0_10], %6 {strides = array<i32>} : memref<19x25x8xf32, #tpu.memory_space<vmem>>, vector<16x1x8xf32>,
    %c0_11 = arith.constant 0 : index
    %c0_12 = arith.constant 0 : index
    %c0_13 = arith.constant 0 : index
    %8 = vector.load %arg1[%c0_11, %c0_12, %c0_13] : memref<16x16x8xf32, #tpu.memory_space<vmem>>, vector<16x16x8xf32>
    %c1_14 = arith.constant 1 : index
    %c8 = arith.constant 8 : index
    %c0_15 = arith.constant 0 : index
    %9 = vector.load %arg3[%c1_14, %c8, %c0_15] : memref<19x25x8xf32, #tpu.memory_space<vmem>>, vector<16x16x8xf32>
    tpu.vector_store %arg3[%c1_14, %c8, %c0_15], %8 {strides = array<i32>} : memref<19x25x8xf32, #tpu.memory_space<vmem>>, vector<16x16x8xf32>,
    %c0_16 = arith.constant 0 : index
    %c0_17 = arith.constant 0 : index
    %c0_18 = arith.constant 0 : index
    %10 = vector.load %arg3[%c0_16, %c0_17, %c0_18] : memref<19x25x8xf32, #tpu.memory_space<vmem>>, vector<18x25x8xf32>
    %11 = vector.shape_cast %10 : vector<18x25x8xf32> to vector<9x2x25x8xf32>
    %12 = vector.extract_strided_slice %11 {offsets = [0, 0, 0, 0], sizes = [9, 1, 25, 8], strides = [1, 1, 1, 1]} : vector<9x2x25x8xf32> to vector<9x1x25x8xf32>
    %13 = vector.shape_cast %12 : vector<9x1x25x8xf32> to vector<9x25x8xf32>
    %c1_19 = arith.constant 1 : index
    %c0_20 = arith.constant 0 : index
    %c0_21 = arith.constant 0 : index
    %14 = vector.load %arg3[%c1_19, %c0_20, %c0_21] : memref<19x25x8xf32, #tpu.memory_space<vmem>>, vector<18x25x8xf32>
    %15 = vector.shape_cast %14 : vector<18x25x8xf32> to vector<9x2x25x8xf32>
    %16 = vector.extract_strided_slice %15 {offsets = [0, 0, 0, 0], sizes = [9, 1, 25, 8], strides = [1, 1, 1, 1]} : vector<9x2x25x8xf32> to vector<9x1x25x8xf32>
    %17 = vector.shape_cast %16 : vector<9x1x25x8xf32> to vector<9x25x8xf32>
    %18 = arith.minimumf %13, %17 : vector<9x25x8xf32>
    %c0_22 = arith.constant 0 : index
    %c0_23 = arith.constant 0 : index
    %c0_24 = arith.constant 0 : index
    %19 = vector.load %arg4[%c0_22, %c0_23, %c0_24] : memref<9x25x8xf32, #tpu.memory_space<vmem>>, vector<9x25x8xf32>
    tpu.vector_store %arg4[%c0_22, %c0_23, %c0_24], %18 {strides = array<i32>} : memref<9x25x8xf32, #tpu.memory_space<vmem>>, vector<9x25x8xf32>,
    %c0_25 = arith.constant 0 : index
    %c7 = arith.constant 7 : index
    %c0_26 = arith.constant 0 : index
    %20 = tpu.strided_load %arg4[%c0_25, %c7, %c0_26] {strides = array<i32: 1, 2, 1>} : memref<9x25x8xf32, #tpu.memory_space<vmem>>, vector<9x9x8xf32>
    %c0_27 = arith.constant 0 : index
    %c8_28 = arith.constant 8 : index
    %c0_29 = arith.constant 0 : index
    %21 = tpu.strided_load %arg4[%c0_27, %c8_28, %c0_29] {strides = array<i32: 1, 2, 1>} : memref<9x25x8xf32, #tpu.memory_space<vmem>>, vector<9x9x8xf32>
    %22 = arith.minimumf %20, %21 : vector<9x9x8xf32>
    %c0_30 = arith.constant 0 : index
    %c0_31 = arith.constant 0 : index
    %c0_32 = arith.constant 0 : index
    %23 = vector.load %arg2[%c0_30, %c0_31, %c0_32] : memref<9x9x8xf32, #tpu.memory_space<vmem>>, vector<9x9x8xf32>
    tpu.vector_store %arg2[%c0_30, %c0_31, %c0_32], %22 {strides = array<i32>} : memref<9x9x8xf32, #tpu.memory_space<vmem>>, vector<9x9x8xf32>,
    return
  }
  func.func @transform_0(%arg0: i32) -> (i32, i32, i32) {
    %c0_i32 = arith.constant 0 : i32
    %c0_i32_0 = arith.constant 0 : i32
    %c0_i32_1 = arith.constant 0 : i32
    return %c0_i32, %c0_i32_0, %arg0 : i32, i32, i32
  }
  func.func @transform_1(%arg0: i32) -> (i32, i32, i32) {
    %c0_i32 = arith.constant 0 : i32
    %c0_i32_0 = arith.constant 0 : i32
    %c0_i32_1 = arith.constant 0 : i32
    return %c0_i32, %c0_i32_0, %arg0 : i32, i32, i32
  }
}

</mosaic_0001>

<llo_original>
// kernel: tpu_custom_call.1
$region0: #{tpu_custom_call.1}
  #allocation0 [shape = 'u32[]', space=smem, size = 0x4, offset = 0x4, fixed_abs, tag = 'smem constant byte address 0x4 - core index']
  #allocation1 [shape = 'u32[144,128]{1,0:T(1,128)}', space=vmem, size = 0x12000, scoped, tag = 'internal scratch']
  #allocation2 [shape = 'f32[18,25,8]{2,1,0:T(8,128)}', space=vmem, size = 0x48000, scoped, tag = 'scratch operand']
  #allocation3 [shape = 'f32[9,25,8]{2,1,0:T(8,128)}', space=vmem, size = 0x24000, scoped, tag = 'scratch operand']
  %s0 = inlined_call_operand.vmem [shape: f32[16,16,8], index: 0, kind: input, shape index: {}]
  %s1 = inlined_call_operand.vmem [shape: f32[9,9,8], index: 1, kind: output, shape index: {}]
  %s2 = sld [smem:[#allocation0]]
  $region14: #{tpu_custom_call.1} parent=0
    _
  %s4 = ssub.s32 1, %s2
  %s5 = scalar_select 0, %s4, %s2
  // Predicated region
  $region2: #{tpu_custom_call.1} parent=0 // pred_check
    _
  $region3: #{tpu_custom_call.1} parent=0 // pred_check_branch
    %7 = sbr.rel (0) target = $region5
  $region4: #{tpu_custom_call.1} parent=0 // pred_region
    _
  $region5: #{tpu_custom_call.1} parent=0 // pred_fallthru
    _
  %vm8 = vcmask 64512
  %9 = vst.msk [vmem:[#allocation2] sm:$0xff] %vm8, 4.0
  %10 = vst.msk [vmem:[#allocation2 + $0x8] sm:$0xff] %vm8, 4.0
  %11 = vst.msk [vmem:[#allocation2 + $0x10] sm:$0xff] %vm8, 4.0
  %vm12 = vcmask 57344
  %13 = vst.msk [vmem:[#allocation2 + $0x18] sm:$0x1] %vm12, 4.0
  %s14 = scalar_lea.vmem [#allocation2], 544
  %15 = vst.msk [vmem:[%s14] sm:$0xff] %vm8, 4.0
  %16 = vst.msk [vmem:[%s14 + $0x8] sm:$0xff] %vm8, 4.0
  %17 = vst.msk [vmem:[%s14 + $0x10] sm:$0xff] %vm8, 4.0
  %18 = vst.msk [vmem:[%s14 + $0x18] sm:$0x1] %vm12, 4.0
  %s19 = scalar_lea.vmem [#allocation2], 32
  %20 = vst.msk [vmem:[%s19] sm:$0xff] %vm8, 4.0
  %21 = vst.msk [vmem:[%s19 + $0x20] sm:$0xff] %vm8, 4.0
  %22 = vst.msk [vmem:[%s19 + $0x40] sm:$0xff] %vm8, 4.0
  %23 = vst.msk [vmem:[%s19 + $0x60] sm:$0xff] %vm8, 4.0
  %24 = vst.msk [vmem:[%s19 + $0x80] sm:$0xff] %vm8, 4.0
  %25 = vst.msk [vmem:[%s19 + $0xa0] sm:$0xff] %vm8, 4.0
  %26 = vst.msk [vmem:[%s19 + $0xc0] sm:$0xff] %vm8, 4.0
  %27 = vst.msk [vmem:[%s19 + $0xe0] sm:$0xff] %vm8, 4.0
  %28 = vst.msk [vmem:[%s19 + $0x100] sm:$0xff] %vm8, 4.0
  %29 = vst.msk [vmem:[%s19 + $0x120] sm:$0xff] %vm8, 4.0
  %30 = vst.msk [vmem:[%s19 + $0x140] sm:$0xff] %vm8, 4.0
  %31 = vst.msk [vmem:[%s19 + $0x160] sm:$0xff] %vm8, 4.0
  %32 = vst.msk [vmem:[%s19 + $0x180] sm:$0xff] %vm8, 4.0
  %33 = vst.msk [vmem:[%s19 + $0x1a0] sm:$0xff] %vm8, 4.0
  %34 = vst.msk [vmem:[%s19 + $0x1c0] sm:$0xff] %vm8, 4.0
  %35 = vst.msk [vmem:[%s19 + $0x1e0] sm:$0xff] %vm8, 4.0
  %36 = vst.msk [vmem:[%s19 + $0x18] sm:$0x1] %vm12, 4.0
  %37 = vst.msk [vmem:[%s19 + $0x38] sm:$0x1] %vm12, 4.0
  %38 = vst.msk [vmem:[%s19 + $0x58] sm:$0x1] %vm12, 4.0
  %39 = vst.msk [vmem:[%s19 + $0x78] sm:$0x1] %vm12, 4.0
  %40 = vst.msk [vmem:[%s19 + $0x98] sm:$0x1] %vm12, 4.0
  %41 = vst.msk [vmem:[%s19 + $0xb8] sm:$0x1] %vm12, 4.0
  %42 = vst.msk [vmem:[%s19 + $0xd8] sm:$0x1] %vm12, 4.0
  %43 = vst.msk [vmem:[%s19 + $0xf8] sm:$0x1] %vm12, 4.0
  %44 = vst.msk [vmem:[%s19 + $0x118] sm:$0x1] %vm12, 4.0
  %45 = vst.msk [vmem:[%s19 + $0x138] sm:$0x1] %vm12, 4.0
  %46 = vst.msk [vmem:[%s19 + $0x158] sm:$0x1] %vm12, 4.0
  %47 = vst.msk [vmem:[%s19 + $0x178] sm:$0x1] %vm12, 4.0
  %48 = vst.msk [vmem:[%s19 + $0x198] sm:$0x1] %vm12, 4.0
  %49 = vst.msk [vmem:[%s19 + $0x1b8] sm:$0x1] %vm12, 4.0
  %50 = vst.msk [vmem:[%s19 + $0x1d8] sm:$0x1] %vm12, 4.0
  %51 = vst.msk [vmem:[%s19 + $0x1f8] sm:$0x1] %vm12, 4.0
  %v52 = vld [vmem:[%s0] sm:$0xff]
  %v53 = vld [vmem:[%s0 + $0x8] sm:$0xff]
  %v54 = vld [vmem:[%s0 + $0x10] sm:$0xff]
  %v55 = vld [vmem:[%s0 + $0x18] sm:$0xff]
  %v56 = vld [vmem:[%s0 + $0x20] sm:$0xff]
  %v57 = vld [vmem:[%s0 + $0x28] sm:$0xff]
  %v58 = vld [vmem:[%s0 + $0x30] sm:$0xff]
  %v59 = vld [vmem:[%s0 + $0x38] sm:$0xff]
  %v60 = vld [vmem:[%s0 + $0x40] sm:$0xff]
  %v61 = vld [vmem:[%s0 + $0x48] sm:$0xff]
  %v62 = vld [vmem:[%s0 + $0x50] sm:$0xff]
  %v63 = vld [vmem:[%s0 + $0x58] sm:$0xff]
  %v64 = vld [vmem:[%s0 + $0x60] sm:$0xff]
  %v65 = vld [vmem:[%s0 + $0x68] sm:$0xff]
  %v66 = vld [vmem:[%s0 + $0x70] sm:$0xff]
  %v67 = vld [vmem:[%s0 + $0x78] sm:$0xff]
  %v68 = vld [vmem:[%s0 + $0x80] sm:$0xff]
  %v69 = vld [vmem:[%s0 + $0x88] sm:$0xff]
  %v70 = vld [vmem:[%s0 + $0x90] sm:$0xff]
  %v71 = vld [vmem:[%s0 + $0x98] sm:$0xff]
  %v72 = vld [vmem:[%s0 + $0xa0] sm:$0xff]
  %v73 = vld [vmem:[%s0 + $0xa8] sm:$0xff]
  %v74 = vld [vmem:[%s0 + $0xb0] sm:$0xff]
  %v75 = vld [vmem:[%s0 + $0xb8] sm:$0xff]
  %v76 = vld [vmem:[%s0 + $0xc0] sm:$0xff]
  %v77 = vld [vmem:[%s0 + $0xc8] sm:$0xff]
  %v78 = vld [vmem:[%s0 + $0xd0] sm:$0xff]
  %v79 = vld [vmem:[%s0 + $0xd8] sm:$0xff]
  %v80 = vld [vmem:[%s0 + $0xe0] sm:$0xff]
  %v81 = vld [vmem:[%s0 + $0xe8] sm:$0xff]
  %v82 = vld [vmem:[%s0 + $0xf0] sm:$0xff]
  %v83 = vld [vmem:[%s0 + $0xf8] sm:$0xff]
  %84 = vst.msk [vmem:[%s19 + $0x8] sm:$0xff] %vm8, %v52
  %85 = vst.msk [vmem:[%s19 + $0x10] sm:$0xff] %vm8, %v53
  %86 = vst.msk [vmem:[%s19 + $0x28] sm:$0xff] %vm8, %v54
  %87 = vst.msk [vmem:[%s19 + $0x30] sm:$0xff] %vm8, %v55
  %88 = vst.msk [vmem:[%s19 + $0x48] sm:$0xff] %vm8, %v56
  %89 = vst.msk [vmem:[%s19 + $0x50] sm:$0xff] %vm8, %v57
  %90 = vst.msk [vmem:[%s19 + $0x68] sm:$0xff] %vm8, %v58
  %91 = vst.msk [vmem:[%s19 + $0x70] sm:$0xff] %vm8, %v59
  %92 = vst.msk [vmem:[%s19 + $0x88] sm:$0xff] %vm8, %v60
  %93 = vst.msk [vmem:[%s19 + $0x90] sm:$0xff] %vm8, %v61
  %94 = vst.msk [vmem:[%s19 + $0xa8] sm:$0xff] %vm8, %v62
  %95 = vst.msk [vmem:[%s19 + $0xb0] sm:$0xff] %vm8, %v63
  %96 = vst.msk [vmem:[%s19 + $0xc8] sm:$0xff] %vm8, %v64
  %97 = vst.msk [vmem:[%s19 + $0xd0] sm:$0xff] %vm8, %v65
  %98 = vst.msk [vmem:[%s19 + $0xe8] sm:$0xff] %vm8, %v66
  %99 = vst.msk [vmem:[%s19 + $0xf0] sm:$0xff] %vm8, %v67
  %100 = vst.msk [vmem:[%s19 + $0x108] sm:$0xff] %vm8, %v68
  %101 = vst.msk [vmem:[%s19 + $0x110] sm:$0xff] %vm8, %v69
  %102 = vst.msk [vmem:[%s19 + $0x128] sm:$0xff] %vm8, %v70
  %103 = vst.msk [vmem:[%s19 + $0x130] sm:$0xff] %vm8, %v71
  %104 = vst.msk [vmem:[%s19 + $0x148] sm:$0xff] %vm8, %v72
  %105 = vst.msk [vmem:[%s19 + $0x150] sm:$0xff] %vm8, %v73
  %106 = vst.msk [vmem:[%s19 + $0x168] sm:$0xff] %vm8, %v74
  %107 = vst.msk [vmem:[%s19 + $0x170] sm:$0xff] %vm8, %v75
  %108 = vst.msk [vmem:[%s19 + $0x188] sm:$0xff] %vm8, %v76
  %109 = vst.msk [vmem:[%s19 + $0x190] sm:$0xff] %vm8, %v77
  %110 = vst.msk [vmem:[%s19 + $0x1a8] sm:$0xff] %vm8, %v78
  %111 = vst.msk [vmem:[%s19 + $0x1b0] sm:$0xff] %vm8, %v79
  %112 = vst.msk [vmem:[%s19 + $0x1c8] sm:$0xff] %vm8, %v80
  %113 = vst.msk [vmem:[%s19 + $0x1d0] sm:$0xff] %vm8, %v81
  %114 = vst.msk [vmem:[%s19 + $0x1e8] sm:$0xff] %vm8, %v82
  %115 = vst.msk [vmem:[%s19 + $0x1f0] sm:$0xff] %vm8, %v83
  %v116 = vld [vmem:[#allocation2] sm:$0xff]
  %v117 = vld [vmem:[#allocation2 + $0x8] sm:$0xff]
  %v118 = vld [vmem:[#allocation2 + $0x10] sm:$0xff]
  %v119 = vld [vmem:[#allocation2 + $0x18] sm:$0x1]
  %v120 = vld [vmem:[#allocation2 + $0x40] sm:$0xff]
  %v121 = vld [vmem:[#allocation2 + $0x48] sm:$0xff]
  %v122 = vld [vmem:[#allocation2 + $0x50] sm:$0xff]
  %v123 = vld [vmem:[#allocation2 + $0x58] sm:$0x1]
  %v124 = vld [vmem:[#allocation2 + $0x80] sm:$0xff]
  %v125 = vld [vmem:[#allocation2 + $0x88] sm:$0xff]
  %v126 = vld [vmem:[#allocation2 + $0x90] sm:$0xff]
  %v127 = vld [vmem:[#allocation2 + $0x98] sm:$0x1]
  %v128 = vld [vmem:[#allocation2 + $0xc0] sm:$0xff]
  %v129 = vld [vmem:[#allocation2 + $0xc8] sm:$0xff]
  %v130 = vld [vmem:[#allocation2 + $0xd0] sm:$0xff]
  %v131 = vld [vmem:[#allocation2 + $0xd8] sm:$0x1]
  %v132 = vld [vmem:[#allocation2 + $0x100] sm:$0xff]
  %v133 = vld [vmem:[#allocation2 + $0x108] sm:$0xff]
  %v134 = vld [vmem:[#allocation2 + $0x110] sm:$0xff]
  %v135 = vld [vmem:[#allocation2 + $0x118] sm:$0x1]
  %v136 = vld [vmem:[#allocation2 + $0x140] sm:$0xff]
  %v137 = vld [vmem:[#allocation2 + $0x148] sm:$0xff]
  %v138 = vld [vmem:[#allocation2 + $0x150] sm:$0xff]
  %v139 = vld [vmem:[#allocation2 + $0x158] sm:$0x1]
  %v140 = vld [vmem:[#allocation2 + $0x180] sm:$0xff]
  %v141 = vld [vmem:[#allocation2 + $0x188] sm:$0xff]
  %v142 = vld [vmem:[#allocation2 + $0x190] sm:$0xff]
  %v143 = vld [vmem:[#allocation2 + $0x198] sm:$0x1]
  %v144 = vld [vmem:[#allocation2 + $0x1c0] sm:$0xff]
  %v145 = vld [vmem:[#allocation2 + $0x1c8] sm:$0xff]
  %v146 = vld [vmem:[#allocation2 + $0x1d0] sm:$0xff]
  %v147 = vld [vmem:[#allocation2 + $0x1d8] sm:$0x1]
  %v148 = vld [vmem:[#allocation2 + $0x200] sm:$0xff]
  %v149 = vld [vmem:[#allocation2 + $0x208] sm:$0xff]
  %v150 = vld [vmem:[#allocation2 + $0x210] sm:$0xff]
  %v151 = vld [vmem:[#allocation2 + $0x218] sm:$0x1]
  %v152 = vld [vmem:[%s19] sm:$0xff]
  %v153 = vld [vmem:[%s19 + $0x8] sm:$0xff]
  %v154 = vld [vmem:[%s19 + $0x10] sm:$0xff]
  %v155 = vld [vmem:[%s19 + $0x18] sm:$0x1]
  %v156 = vld [vmem:[%s19 + $0x40] sm:$0xff]
  %v157 = vld [vmem:[%s19 + $0x48] sm:$0xff]
  %v158 = vld [vmem:[%s19 + $0x50] sm:$0xff]
  %v159 = vld [vmem:[%s19 + $0x58] sm:$0x1]
  %v160 = vld [vmem:[%s19 + $0x80] sm:$0xff]
  %v161 = vld [vmem:[%s19 + $0x88] sm:$0xff]
  %v162 = vld [vmem:[%s19 + $0x90] sm:$0xff]
  %v163 = vld [vmem:[%s19 + $0x98] sm:$0x1]
  %v164 = vld [vmem:[%s19 + $0xc0] sm:$0xff]
  %v165 = vld [vmem:[%s19 + $0xc8] sm:$0xff]
  %v166 = vld [vmem:[%s19 + $0xd0] sm:$0xff]
  %v167 = vld [vmem:[%s19 + $0xd8] sm:$0x1]
  %v168 = vld [vmem:[%s19 + $0x100] sm:$0xff]
  %v169 = vld [vmem:[%s19 + $0x108] sm:$0xff]
  %v170 = vld [vmem:[%s19 + $0x110] sm:$0xff]
  %v171 = vld [vmem:[%s19 + $0x118] sm:$0x1]
  %v172 = vld [vmem:[%s19 + $0x140] sm:$0xff]
  %v173 = vld [vmem:[%s19 + $0x148] sm:$0xff]
  %v174 = vld [vmem:[%s19 + $0x150] sm:$0xff]
  %v175 = vld [vmem:[%s19 + $0x158] sm:$0x1]
  %v176 = vld [vmem:[%s19 + $0x180] sm:$0xff]
  %v177 = vld [vmem:[%s19 + $0x188] sm:$0xff]
  %v178 = vld [vmem:[%s19 + $0x190] sm:$0xff]
  %v179 = vld [vmem:[%s19 + $0x198] sm:$0x1]
  %v180 = vld [vmem:[%s19 + $0x1c0] sm:$0xff]
  %v181 = vld [vmem:[%s19 + $0x1c8] sm:$0xff]
  %v182 = vld [vmem:[%s19 + $0x1d0] sm:$0xff]
  %v183 = vld [vmem:[%s19 + $0x1d8] sm:$0x1]
  %v184 = vld [vmem:[%s19 + $0x200] sm:$0xff]
  %v185 = vld [vmem:[%s19 + $0x208] sm:$0xff]
  %v186 = vld [vmem:[%s19 + $0x210] sm:$0xff]
  %v187 = vld [vmem:[%s19 + $0x218] sm:$0x1]
  %v188 = vmin.f32 %v116, %v152
  %v189 = vmin.f32 %v117, %v153
  %v190 = vmin.f32 %v118, %v154
  %v191 = vmin.f32 %v119, %v155
  %v192 = vmin.f32 %v120, %v156
  %v193 = vmin.f32 %v121, %v157
  %v194 = vmin.f32 %v122, %v158
  %v195 = vmin.f32 %v123, %v159
  %v196 = vmin.f32 %v124, %v160
  %v197 = vmin.f32 %v125, %v161
  %v198 = vmin.f32 %v126, %v162
  %v199 = vmin.f32 %v127, %v163
  %v200 = vmin.f32 %v128, %v164
  %v201 = vmin.f32 %v129, %v165
  %v202 = vmin.f32 %v130, %v166
  %v203 = vmin.f32 %v131, %v167
  %v204 = vmin.f32 %v132, %v168
  %v205 = vmin.f32 %v133, %v169
  %v206 = vmin.f32 %v134, %v170
  %v207 = vmin.f32 %v135, %v171
  %v208 = vmin.f32 %v136, %v172
  %v209 = vmin.f32 %v137, %v173
  %v210 = vmin.f32 %v138, %v174
  %v211 = vmin.f32 %v139, %v175
  %v212 = vmin.f32 %v140, %v176
  %v213 = vmin.f32 %v141, %v177
  %v214 = vmin.f32 %v142, %v178
  %v215 = vmin.f32 %v143, %v179
  %v216 = vmin.f32 %v144, %v180
  %v217 = vmin.f32 %v145, %v181
  %v218 = vmin.f32 %v146, %v182
  %v219 = vmin.f32 %v147, %v183
  %v220 = vmin.f32 %v148, %v184
  %v221 = vmin.f32 %v149, %v185
  %v222 = vmin.f32 %v150, %v186
  %v223 = vmin.f32 %v151, %v187
  %224 = vst.msk [vmem:[#allocation3] sm:$0xff] %vm8, %v188
  %225 = vst.msk [vmem:[#allocation3 + $0x8] sm:$0xff] %vm8, %v189
  %226 = vst.msk [vmem:[#allocation3 + $0x10] sm:$0xff] %vm8, %v190
  %227 = vst.msk [vmem:[#allocation3 + $0x18] sm:$0x1] %vm12, %v191
  %228 = vst.msk [vmem:[#allocation3 + $0x20] sm:$0xff] %vm8, %v192
  %229 = vst.msk [vmem:[#allocation3 + $0x28] sm:$0xff] %vm8, %v193
  %230 = vst.msk [vmem:[#allocation3 + $0x30] sm:$0xff] %vm8, %v194
  %231 = vst.msk [vmem:[#allocation3 + $0x38] sm:$0x1] %vm12, %v195
  %232 = vst.msk [vmem:[#allocation3 + $0x40] sm:$0xff] %vm8, %v196
  %233 = vst.msk [vmem:[#allocation3 + $0x48] sm:$0xff] %vm8, %v197
  %234 = vst.msk [vmem:[#allocation3 + $0x50] sm:$0xff] %vm8, %v198
  %235 = vst.msk [vmem:[#allocation3 + $0x58] sm:$0x1] %vm12, %v199
  %236 = vst.msk [vmem:[#allocation3 + $0x60] sm:$0xff] %vm8, %v200
  %237 = vst.msk [vmem:[#allocation3 + $0x68] sm:$0xff] %vm8, %v201
  %238 = vst.msk [vmem:[#allocation3 + $0x70] sm:$0xff] %vm8, %v202
  %239 = vst.msk [vmem:[#allocation3 + $0x78] sm:$0x1] %vm12, %v203
  %240 = vst.msk [vmem:[#allocation3 + $0x80] sm:$0xff] %vm8, %v204
  %241 = vst.msk [vmem:[#allocation3 + $0x88] sm:$0xff] %vm8, %v205
  %242 = vst.msk [vmem:[#allocation3 + $0x90] sm:$0xff] %vm8, %v206
  %243 = vst.msk [vmem:[#allocation3 + $0x98] sm:$0x1] %vm12, %v207
  %244 = vst.msk [vmem:[#allocation3 + $0xa0] sm:$0xff] %vm8, %v208
  %245 = vst.msk [vmem:[#allocation3 + $0xa8] sm:$0xff] %vm8, %v209
  %246 = vst.msk [vmem:[#allocation3 + $0xb0] sm:$0xff] %vm8, %v210
  %247 = vst.msk [vmem:[#allocation3 + $0xb8] sm:$0x1] %vm12, %v211
  %248 = vst.msk [vmem:[#allocation3 + $0xc0] sm:$0xff] %vm8, %v212
  %249 = vst.msk [vmem:[#allocation3 + $0xc8] sm:$0xff] %vm8, %v213
  %250 = vst.msk [vmem:[#allocation3 + $0xd0] sm:$0xff] %vm8, %v214
  %251 = vst.msk [vmem:[#allocation3 + $0xd8] sm:$0x1] %vm12, %v215
  %252 = vst.msk [vmem:[#allocation3 + $0xe0] sm:$0xff] %vm8, %v216
  %253 = vst.msk [vmem:[#allocation3 + $0xe8] sm:$0xff] %vm8, %v217
  %254 = vst.msk [vmem:[#allocation3 + $0xf0] sm:$0xff] %vm8, %v218
  %255 = vst.msk [vmem:[#allocation3 + $0xf8] sm:$0x1] %vm12, %v219
  %256 = vst.msk [vmem:[#allocation3 + $0x100] sm:$0xff] %vm8, %v220
  %257 = vst.msk [vmem:[#allocation3 + $0x108] sm:$0xff] %vm8, %v221
  %258 = vst.msk [vmem:[#allocation3 + $0x110] sm:$0xff] %vm8, %v222
  %259 = vst.msk [vmem:[#allocation3 + $0x118] sm:$0x1] %vm12, %v223
  %s260 = scalar_lea.vmem [#allocation3], 7
  %v261 = vld [vmem:[%s260] ss:$2 sm:$0xff]
  %s262 = scalar_lea.vmem [#allocation3], 23
  %v263 = vld [vmem:[%s262] ss:$2 sm:$0x1]
  %s264 = scalar_lea.vmem [#allocation3], 39
  %v265 = vld [vmem:[%s264] ss:$2 sm:$0xff]
  %s266 = scalar_lea.vmem [#allocation3], 55
  %v267 = vld [vmem:[%s266] ss:$2 sm:$0x1]
  %s268 = scalar_lea.vmem [#allocation3], 71
  %v269 = vld [vmem:[%s268] ss:$2 sm:$0xff]
  %s270 = scalar_lea.vmem [#allocation3], 87
  %v271 = vld [vmem:[%s270] ss:$2 sm:$0x1]
  %s272 = scalar_lea.vmem [#allocation3], 103
  %v273 = vld [vmem:[%s272] ss:$2 sm:$0xff]
  %s274 = scalar_lea.vmem [#allocation3], 119
  %v275 = vld [vmem:[%s274] ss:$2 sm:$0x1]
  %s276 = scalar_lea.vmem [#allocation3], 135
  %v277 = vld [vmem:[%s276] ss:$2 sm:$0xff]
  %s278 = scalar_lea.vmem [#allocation3], 151
  %v279 = vld [vmem:[%s278] ss:$2 sm:$0x1]
  %s280 = scalar_lea.vmem [#allocation3], 167
  %v281 = vld [vmem:[%s280] ss:$2 sm:$0xff]
  %s282 = scalar_lea.vmem [#allocation3], 183
  %v283 = vld [vmem:[%s282] ss:$2 sm:$0x1]
  %s284 = scalar_lea.vmem [#allocation3], 199
  %v285 = vld [vmem:[%s284] ss:$2 sm:$0xff]
  %s286 = scalar_lea.vmem [#allocation3], 215
  %v287 = vld [vmem:[%s286] ss:$2 sm:$0x1]
  %s288 = scalar_lea.vmem [#allocation3], 231
  %v289 = vld [vmem:[%s288] ss:$2 sm:$0xff]
  %s290 = scalar_lea.vmem [#allocation3], 247
  %v291 = vld [vmem:[%s290] ss:$2 sm:$0x1]
  %s292 = scalar_lea.vmem [#allocation3], 263
  %v293 = vld [vmem:[%s292] ss:$2 sm:$0xff]
  %s294 = scalar_lea.vmem [#allocation3], 279
  %v295 = vld [vmem:[%s294] ss:$2 sm:$0x1]
  %s296 = scalar_lea.vmem [#allocation3], 8
  %v297 = vld [vmem:[%s296] ss:$2 sm:$0xff]
  %s298 = scalar_lea.vmem [#allocation3], 24
  %v299 = vld [vmem:[%s298] ss:$2 sm:$0x1]
  %s300 = scalar_lea.vmem [#allocation3], 40
  %v301 = vld [vmem:[%s300] ss:$2 sm:$0xff]
  %s302 = scalar_lea.vmem [#allocation3], 56
  %v303 = vld [vmem:[%s302] ss:$2 sm:$0x1]
  %s304 = scalar_lea.vmem [#allocation3], 72
  %v305 = vld [vmem:[%s304] ss:$2 sm:$0xff]
  %s306 = scalar_lea.vmem [#allocation3], 88
  %v307 = vld [vmem:[%s306] ss:$2 sm:$0x1]
  %s308 = scalar_lea.vmem [#allocation3], 104
  %v309 = vld [vmem:[%s308] ss:$2 sm:$0xff]
  %s310 = scalar_lea.vmem [#allocation3], 120
  %v311 = vld [vmem:[%s310] ss:$2 sm:$0x1]
  %s312 = scalar_lea.vmem [#allocation3], 136
  %v313 = vld [vmem:[%s312] ss:$2 sm:$0xff]
  %s314 = scalar_lea.vmem [#allocation3], 152
  %v315 = vld [vmem:[%s314] ss:$2 sm:$0x1]
  %s316 = scalar_lea.vmem [#allocation3], 168
  %v317 = vld [vmem:[%s316] ss:$2 sm:$0xff]
  %s318 = scalar_lea.vmem [#allocation3], 184
  %v319 = vld [vmem:[%s318] ss:$2 sm:$0x1]
  %s320 = scalar_lea.vmem [#allocation3], 200
  %v321 = vld [vmem:[%s320] ss:$2 sm:$0xff]
  %s322 = scalar_lea.vmem [#allocation3], 216
  %v323 = vld [vmem:[%s322] ss:$2 sm:$0x1]
  %s324 = scalar_lea.vmem [#allocation3], 232
  %v325 = vld [vmem:[%s324] ss:$2 sm:$0xff]
  %s326 = scalar_lea.vmem [#allocation3], 248
  %v327 = vld [vmem:[%s326] ss:$2 sm:$0x1]
  %s328 = scalar_lea.vmem [#allocation3], 264
  %v329 = vld [vmem:[%s328] ss:$2 sm:$0xff]
  %s330 = scalar_lea.vmem [#allocation3], 280
  %v331 = vld [vmem:[%s330] ss:$2 sm:$0x1]
  %v332 = vmin.f32 %v261, %v297
  %v333 = vmin.f32 %v263, %v299
  %v334 = vmin.f32 %v265, %v301
  %v335 = vmin.f32 %v267, %v303
  %v336 = vmin.f32 %v269, %v305
  %v337 = vmin.f32 %v271, %v307
  %v338 = vmin.f32 %v273, %v309
  %v339 = vmin.f32 %v275, %v311
  %v340 = vmin.f32 %v277, %v313
  %v341 = vmin.f32 %v279, %v315
  %v342 = vmin.f32 %v281, %v317
  %v343 = vmin.f32 %v283, %v319
  %v344 = vmin.f32 %v285, %v321
  %v345 = vmin.f32 %v287, %v323
  %v346 = vmin.f32 %v289, %v325
  %v347 = vmin.f32 %v291, %v327
  %v348 = vmin.f32 %v293, %v329
  %v349 = vmin.f32 %v295, %v331
  %350 = vst.msk [vmem:[%s1] sm:$0xff] %vm8, %v332
  %351 = vst.msk [vmem:[%s1 + $0x8] sm:$0x1] %vm12, %v333
  %352 = vst.msk [vmem:[%s1 + $0x10] sm:$0xff] %vm8, %v334
  %353 = vst.msk [vmem:[%s1 + $0x18] sm:$0x1] %vm12, %v335
  %354 = vst.msk [vmem:[%s1 + $0x20] sm:$0xff] %vm8, %v336
  %355 = vst.msk [vmem:[%s1 + $0x28] sm:$0x1] %vm12, %v337
  %356 = vst.msk [vmem:[%s1 + $0x30] sm:$0xff] %vm8, %v338
  %357 = vst.msk [vmem:[%s1 + $0x38] sm:$0x1] %vm12, %v339
  %358 = vst.msk [vmem:[%s1 + $0x40] sm:$0xff] %vm8, %v340
  %359 = vst.msk [vmem:[%s1 + $0x48] sm:$0x1] %vm12, %v341
  %360 = vst.msk [vmem:[%s1 + $0x50] sm:$0xff] %vm8, %v342
  %361 = vst.msk [vmem:[%s1 + $0x58] sm:$0x1] %vm12, %v343
  %362 = vst.msk [vmem:[%s1 + $0x60] sm:$0xff] %vm8, %v344
  %363 = vst.msk [vmem:[%s1 + $0x68] sm:$0x1] %vm12, %v345
  %364 = vst.msk [vmem:[%s1 + $0x70] sm:$0xff] %vm8, %v346
  %365 = vst.msk [vmem:[%s1 + $0x78] sm:$0x1] %vm12, %v347
  %366 = vst.msk [vmem:[%s1 + $0x80] sm:$0xff] %vm8, %v348
  %367 = vst.msk [vmem:[%s1 + $0x88] sm:$0x1] %vm12, %v349
  // Predicated region
  $region6: #{tpu_custom_call.1} parent=0 // pred_check
    _
  $region7: #{tpu_custom_call.1} parent=0 // pred_check_branch
    %369 = sbr.rel (0) target = $region9
  $region8: #{tpu_custom_call.1} parent=0 // pred_region
    _
  $region9: #{tpu_custom_call.1} parent=0 // pred_fallthru
    _
  // Predicated region
  $region10: #{tpu_custom_call.1} parent=0 // pred_check
    _
  $region11: #{tpu_custom_call.1} parent=0 // pred_check_branch
    %371 = sbr.rel (0) target = $region13
  $region12: #{tpu_custom_call.1} parent=0 // pred_region
    _
  $region13: #{tpu_custom_call.1} parent=0 // pred_fallthru
    _

// kernel: tpu_custom_call.1
$region0: #{tpu_custom_call.1}
  #allocation0 [shape = 'u32[]', space=smem, size = 0x4, offset = 0x4, fixed_abs, tag = 'smem constant byte address 0x4 - core index']
  #allocation1 [shape = 'u32[144,128]{1,0:T(1,128)}', space=vmem, size = 0x12000, scoped, tag = 'internal scratch']
  #allocation2 [shape = 'f32[19,25,8]{2,1,0:T(8,128)}', space=vmem, size = 0x4c000, scoped, tag = 'scratch operand']
  #allocation3 [shape = 'f32[9,25,8]{2,1,0:T(8,128)}', space=vmem, size = 0x24000, scoped, tag = 'scratch operand']
  %s0 = inlined_call_operand.vmem [shape: f32[16,16,8], index: 0, kind: input, shape index: {}]
  %s1 = inlined_call_operand.vmem [shape: f32[9,9,8], index: 1, kind: output, shape index: {}]
  %s2 = sld [smem:[#allocation0]]
  $region14: #{tpu_custom_call.1} parent=0
    _
  %s4 = ssub.s32 1, %s2
  %s5 = scalar_select 0, %s4, %s2
  // Predicated region
  $region2: #{tpu_custom_call.1} parent=0 // pred_check
    _
  $region3: #{tpu_custom_call.1} parent=0 // pred_check_branch
    %7 = sbr.rel (0) target = $region5
  $region4: #{tpu_custom_call.1} parent=0 // pred_region
    _
  $region5: #{tpu_custom_call.1} parent=0 // pred_fallthru
    _
  %vm8 = vcmask 64512
  %9 = vst.msk [vmem:[#allocation2] sm:$0xff] %vm8, 4.0
  %10 = vst.msk [vmem:[#allocation2 + $0x8] sm:$0xff] %vm8, 4.0
  %11 = vst.msk [vmem:[#allocation2 + $0x10] sm:$0xff] %vm8, 4.0
  %vm12 = vcmask 57344
  %13 = vst.msk [vmem:[#allocation2 + $0x18] sm:$0x1] %vm12, 4.0
  %s14 = scalar_lea.vmem [#allocation2], 544
  %15 = vst.msk [vmem:[%s14] sm:$0xff] %vm8, 4.0
  %16 = vst.msk [vmem:[%s14 + $0x8] sm:$0xff] %vm8, 4.0
  %17 = vst.msk [vmem:[%s14 + $0x10] sm:$0xff] %vm8, 4.0
  %18 = vst.msk [vmem:[%s14 + $0x18] sm:$0x1] %vm12, 4.0
  %19 = vst.msk [vmem:[%s14 + $0x20] sm:$0xff] %vm8, 4.0
  %20 = vst.msk [vmem:[%s14 + $0x28] sm:$0xff] %vm8, 4.0
  %21 = vst.msk [vmem:[%s14 + $0x30] sm:$0xff] %vm8, 4.0
  %22 = vst.msk [vmem:[%s14 + $0x38] sm:$0x1] %vm12, 4.0
  %s23 = scalar_lea.vmem [#allocation2], 32
  %24 = vst.msk [vmem:[%s23] sm:$0xff] %vm8, 4.0
  %25 = vst.msk [vmem:[%s23 + $0x20] sm:$0xff] %vm8, 4.0
  %26 = vst.msk [vmem:[%s23 + $0x40] sm:$0xff] %vm8, 4.0
  %27 = vst.msk [vmem:[%s23 + $0x60] sm:$0xff] %vm8, 4.0
  %28 = vst.msk [vmem:[%s23 + $0x80] sm:$0xff] %vm8, 4.0
  %29 = vst.msk [vmem:[%s23 + $0xa0] sm:$0xff] %vm8, 4.0
  %30 = vst.msk [vmem:[%s23 + $0xc0] sm:$0xff] %vm8, 4.0
  %31 = vst.msk [vmem:[%s23 + $0xe0] sm:$0xff] %vm8, 4.0
  %32 = vst.msk [vmem:[%s23 + $0x100] sm:$0xff] %vm8, 4.0
  %33 = vst.msk [vmem:[%s23 + $0x120] sm:$0xff] %vm8, 4.0
  %34 = vst.msk [vmem:[%s23 + $0x140] sm:$0xff] %vm8, 4.0
  %35 = vst.msk [vmem:[%s23 + $0x160] sm:$0xff] %vm8, 4.0
  %36 = vst.msk [vmem:[%s23 + $0x180] sm:$0xff] %vm8, 4.0
  %37 = vst.msk [vmem:[%s23 + $0x1a0] sm:$0xff] %vm8, 4.0
  %38 = vst.msk [vmem:[%s23 + $0x1c0] sm:$0xff] %vm8, 4.0
  %39 = vst.msk [vmem:[%s23 + $0x1e0] sm:$0xff] %vm8, 4.0
  %40 = vst.msk [vmem:[%s23 + $0x18] sm:$0x1] %vm12, 4.0
  %41 = vst.msk [vmem:[%s23 + $0x38] sm:$0x1] %vm12, 4.0
  %42 = vst.msk [vmem:[%s23 + $0x58] sm:$0x1] %vm12, 4.0
  %43 = vst.msk [vmem:[%s23 + $0x78] sm:$0x1] %vm12, 4.0
  %44 = vst.msk [vmem:[%s23 + $0x98] sm:$0x1] %vm12, 4.0
  %45 = vst.msk [vmem:[%s23 + $0xb8] sm:$0x1] %vm12, 4.0
  %46 = vst.msk [vmem:[%s23 + $0xd8] sm:$0x1] %vm12, 4.0
  %47 = vst.msk [vmem:[%s23 + $0xf8] sm:$0x1] %vm12, 4.0
  %48 = vst.msk [vmem:[%s23 + $0x118] sm:$0x1] %vm12, 4.0
  %49 = vst.msk [vmem:[%s23 + $0x138] sm:$0x1] %vm12, 4.0
  %50 = vst.msk [vmem:[%s23 + $0x158] sm:$0x1] %vm12, 4.0
  %51 = vst.msk [vmem:[%s23 + $0x178] sm:$0x1] %vm12, 4.0
  %52 = vst.msk [vmem:[%s23 + $0x198] sm:$0x1] %vm12, 4.0
  %53 = vst.msk [vmem:[%s23 + $0x1b8] sm:$0x1] %vm12, 4.0
  %54 = vst.msk [vmem:[%s23 + $0x1d8] sm:$0x1] %vm12, 4.0
  %55 = vst.msk [vmem:[%s23 + $0x1f8] sm:$0x1] %vm12, 4.0
  %v56 = vld [vmem:[%s0] sm:$0xff]
  %v57 = vld [vmem:[%s0 + $0x8] sm:$0xff]
  %v58 = vld [vmem:[%s0 + $0x10] sm:$0xff]
  %v59 = vld [vmem:[%s0 + $0x18] sm:$0xff]
  %v60 = vld [vmem:[%s0 + $0x20] sm:$0xff]
  %v61 = vld [vmem:[%s0 + $0x28] sm:$0xff]
  %v62 = vld [vmem:[%s0 + $0x30] sm:$0xff]
  %v63 = vld [vmem:[%s0 + $0x38] sm:$0xff]
  %v64 = vld [vmem:[%s0 + $0x40] sm:$0xff]
  %v65 = vld [vmem:[%s0 + $0x48] sm:$0xff]
  %v66 = vld [vmem:[%s0 + $0x50] sm:$0xff]
  %v67 = vld [vmem:[%s0 + $0x58] sm:$0xff]
  %v68 = vld [vmem:[%s0 + $0x60] sm:$0xff]
  %v69 = vld [vmem:[%s0 + $0x68] sm:$0xff]
  %v70 = vld [vmem:[%s0 + $0x70] sm:$0xff]
  %v71 = vld [vmem:[%s0 + $0x78] sm:$0xff]
  %v72 = vld [vmem:[%s0 + $0x80] sm:$0xff]
  %v73 = vld [vmem:[%s0 + $0x88] sm:$0xff]
  %v74 = vld [vmem:[%s0 + $0x90] sm:$0xff]
  %v75 = vld [vmem:[%s0 + $0x98] sm:$0xff]
  %v76 = vld [vmem:[%s0 + $0xa0] sm:$0xff]
  %v77 = vld [vmem:[%s0 + $0xa8] sm:$0xff]
  %v78 = vld [vmem:[%s0 + $0xb0] sm:$0xff]
  %v79 = vld [vmem:[%s0 + $0xb8] sm:$0xff]
  %v80 = vld [vmem:[%s0 + $0xc0] sm:$0xff]
  %v81 = vld [vmem:[%s0 + $0xc8] sm:$0xff]
  %v82 = vld [vmem:[%s0 + $0xd0] sm:$0xff]
  %v83 = vld [vmem:[%s0 + $0xd8] sm:$0xff]
  %v84 = vld [vmem:[%s0 + $0xe0] sm:$0xff]
  %v85 = vld [vmem:[%s0 + $0xe8] sm:$0xff]
  %v86 = vld [vmem:[%s0 + $0xf0] sm:$0xff]
  %v87 = vld [vmem:[%s0 + $0xf8] sm:$0xff]
  %88 = vst.msk [vmem:[%s23 + $0x8] sm:$0xff] %vm8, %v56
  %89 = vst.msk [vmem:[%s23 + $0x10] sm:$0xff] %vm8, %v57
  %90 = vst.msk [vmem:[%s23 + $0x28] sm:$0xff] %vm8, %v58
  %91 = vst.msk [vmem:[%s23 + $0x30] sm:$0xff] %vm8, %v59
  %92 = vst.msk [vmem:[%s23 + $0x48] sm:$0xff] %vm8, %v60
  %93 = vst.msk [vmem:[%s23 + $0x50] sm:$0xff] %vm8, %v61
  %94 = vst.msk [vmem:[%s23 + $0x68] sm:$0xff] %vm8, %v62
  %95 = vst.msk [vmem:[%s23 + $0x70] sm:$0xff] %vm8, %v63
  %96 = vst.msk [vmem:[%s23 + $0x88] sm:$0xff] %vm8, %v64
  %97 = vst.msk [vmem:[%s23 + $0x90] sm:$0xff] %vm8, %v65
  %98 = vst.msk [vmem:[%s23 + $0xa8] sm:$0xff] %vm8, %v66
  %99 = vst.msk [vmem:[%s23 + $0xb0] sm:$0xff] %vm8, %v67
  %100 = vst.msk [vmem:[%s23 + $0xc8] sm:$0xff] %vm8, %v68
  %101 = vst.msk [vmem:[%s23 + $0xd0] sm:$0xff] %vm8, %v69
  %102 = vst.msk [vmem:[%s23 + $0xe8] sm:$0xff] %vm8, %v70
  %103 = vst.msk [vmem:[%s23 + $0xf0] sm:$0xff] %vm8, %v71
  %104 = vst.msk [vmem:[%s23 + $0x108] sm:$0xff] %vm8, %v72
  %105 = vst.msk [vmem:[%s23 + $0x110] sm:$0xff] %vm8, %v73
  %106 = vst.msk [vmem:[%s23 + $0x128] sm:$0xff] %vm8, %v74
  %107 = vst.msk [vmem:[%s23 + $0x130] sm:$0xff] %vm8, %v75
  %108 = vst.msk [vmem:[%s23 + $0x148] sm:$0xff] %vm8, %v76
  %109 = vst.msk [vmem:[%s23 + $0x150] sm:$0xff] %vm8, %v77
  %110 = vst.msk [vmem:[%s23 + $0x168] sm:$0xff] %vm8, %v78
  %111 = vst.msk [vmem:[%s23 + $0x170] sm:$0xff] %vm8, %v79
  %112 = vst.msk [vmem:[%s23 + $0x188] sm:$0xff] %vm8, %v80
  %113 = vst.msk [vmem:[%s23 + $0x190] sm:$0xff] %vm8, %v81
  %114 = vst.msk [vmem:[%s23 + $0x1a8] sm:$0xff] %vm8, %v82
  %115 = vst.msk [vmem:[%s23 + $0x1b0] sm:$0xff] %vm8, %v83
  %116 = vst.msk [vmem:[%s23 + $0x1c8] sm:$0xff] %vm8, %v84
  %117 = vst.msk [vmem:[%s23 + $0x1d0] sm:$0xff] %vm8, %v85
  %118 = vst.msk [vmem:[%s23 + $0x1e8] sm:$0xff] %vm8, %v86
  %119 = vst.msk [vmem:[%s23 + $0x1f0] sm:$0xff] %vm8, %v87
  %v120 = vld [vmem:[#allocation2] sm:$0xff]
  %v121 = vld [vmem:[#allocation2 + $0x8] sm:$0xff]
  %v122 = vld [vmem:[#allocation2 + $0x10] sm:$0xff]
  %v123 = vld [vmem:[#allocation2 + $0x18] sm:$0x1]
  %v124 = vld [vmem:[#allocation2 + $0x40] sm:$0xff]
  %v125 = vld [vmem:[#allocation2 + $0x48] sm:$0xff]
  %v126 = vld [vmem:[#allocation2 + $0x50] sm:$0xff]
  %v127 = vld [vmem:[#allocation2 + $0x58] sm:$0x1]
  %v128 = vld [vmem:[#allocation2 + $0x80] sm:$0xff]
  %v129 = vld [vmem:[#allocation2 + $0x88] sm:$0xff]
  %v130 = vld [vmem:[#allocation2 + $0x90] sm:$0xff]
  %v131 = vld [vmem:[#allocation2 + $0x98] sm:$0x1]
  %v132 = vld [vmem:[#allocation2 + $0xc0] sm:$0xff]
  %v133 = vld [vmem:[#allocation2 + $0xc8] sm:$0xff]
  %v134 = vld [vmem:[#allocation2 + $0xd0] sm:$0xff]
  %v135 = vld [vmem:[#allocation2 + $0xd8] sm:$0x1]
  %v136 = vld [vmem:[#allocation2 + $0x100] sm:$0xff]
  %v137 = vld [vmem:[#allocation2 + $0x108] sm:$0xff]
  %v138 = vld [vmem:[#allocation2 + $0x110] sm:$0xff]
  %v139 = vld [vmem:[#allocation2 + $0x118] sm:$0x1]
  %v140 = vld [vmem:[#allocation2 + $0x140] sm:$0xff]
  %v141 = vld [vmem:[#allocation2 + $0x148] sm:$0xff]
  %v142 = vld [vmem:[#allocation2 + $0x150] sm:$0xff]
  %v143 = vld [vmem:[#allocation2 + $0x158] sm:$0x1]
  %v144 = vld [vmem:[#allocation2 + $0x180] sm:$0xff]
  %v145 = vld [vmem:[#allocation2 + $0x188] sm:$0xff]
  %v146 = vld [vmem:[#allocation2 + $0x190] sm:$0xff]
  %v147 = vld [vmem:[#allocation2 + $0x198] sm:$0x1]
  %v148 = vld [vmem:[#allocation2 + $0x1c0] sm:$0xff]
  %v149 = vld [vmem:[#allocation2 + $0x1c8] sm:$0xff]
  %v150 = vld [vmem:[#allocation2 + $0x1d0] sm:$0xff]
  %v151 = vld [vmem:[#allocation2 + $0x1d8] sm:$0x1]
  %v152 = vld [vmem:[#allocation2 + $0x200] sm:$0xff]
  %v153 = vld [vmem:[#allocation2 + $0x208] sm:$0xff]
  %v154 = vld [vmem:[#allocation2 + $0x210] sm:$0xff]
  %v155 = vld [vmem:[#allocation2 + $0x218] sm:$0x1]
  %v156 = vld [vmem:[%s23] sm:$0xff]
  %v157 = vld [vmem:[%s23 + $0x8] sm:$0xff]
  %v158 = vld [vmem:[%s23 + $0x10] sm:$0xff]
  %v159 = vld [vmem:[%s23 + $0x18] sm:$0x1]
  %v160 = vld [vmem:[%s23 + $0x40] sm:$0xff]
  %v161 = vld [vmem:[%s23 + $0x48] sm:$0xff]
  %v162 = vld [vmem:[%s23 + $0x50] sm:$0xff]
  %v163 = vld [vmem:[%s23 + $0x58] sm:$0x1]
  %v164 = vld [vmem:[%s23 + $0x80] sm:$0xff]
  %v165 = vld [vmem:[%s23 + $0x88] sm:$0xff]
  %v166 = vld [vmem:[%s23 + $0x90] sm:$0xff]
  %v167 = vld [vmem:[%s23 + $0x98] sm:$0x1]
  %v168 = vld [vmem:[%s23 + $0xc0] sm:$0xff]
  %v169 = vld [vmem:[%s23 + $0xc8] sm:$0xff]
  %v170 = vld [vmem:[%s23 + $0xd0] sm:$0xff]
  %v171 = vld [vmem:[%s23 + $0xd8] sm:$0x1]
  %v172 = vld [vmem:[%s23 + $0x100] sm:$0xff]
  %v173 = vld [vmem:[%s23 + $0x108] sm:$0xff]
  %v174 = vld [vmem:[%s23 + $0x110] sm:$0xff]
  %v175 = vld [vmem:[%s23 + $0x118] sm:$0x1]
  %v176 = vld [vmem:[%s23 + $0x140] sm:$0xff]
  %v177 = vld [vmem:[%s23 + $0x148] sm:$0xff]
  %v178 = vld [vmem:[%s23 + $0x150] sm:$0xff]
  %v179 = vld [vmem:[%s23 + $0x158] sm:$0x1]
  %v180 = vld [vmem:[%s23 + $0x180] sm:$0xff]
  %v181 = vld [vmem:[%s23 + $0x188] sm:$0xff]
  %v182 = vld [vmem:[%s23 + $0x190] sm:$0xff]
  %v183 = vld [vmem:[%s23 + $0x198] sm:$0x1]
  %v184 = vld [vmem:[%s23 + $0x1c0] sm:$0xff]
  %v185 = vld [vmem:[%s23 + $0x1c8] sm:$0xff]
  %v186 = vld [vmem:[%s23 + $0x1d0] sm:$0xff]
  %v187 = vld [vmem:[%s23 + $0x1d8] sm:$0x1]
  %v188 = vld [vmem:[%s23 + $0x200] sm:$0xff]
  %v189 = vld [vmem:[%s23 + $0x208] sm:$0xff]
  %v190 = vld [vmem:[%s23 + $0x210] sm:$0xff]
  %v191 = vld [vmem:[%s23 + $0x218] sm:$0x1]
  %v192 = vmin.f32 %v120, %v156
  %v193 = vmin.f32 %v121, %v157
  %v194 = vmin.f32 %v122, %v158
  %v195 = vmin.f32 %v123, %v159
  %v196 = vmin.f32 %v124, %v160
  %v197 = vmin.f32 %v125, %v161
  %v198 = vmin.f32 %v126, %v162
  %v199 = vmin.f32 %v127, %v163
  %v200 = vmin.f32 %v128, %v164
  %v201 = vmin.f32 %v129, %v165
  %v202 = vmin.f32 %v130, %v166
  %v203 = vmin.f32 %v131, %v167
  %v204 = vmin.f32 %v132, %v168
  %v205 = vmin.f32 %v133, %v169
  %v206 = vmin.f32 %v134, %v170
  %v207 = vmin.f32 %v135, %v171
  %v208 = vmin.f32 %v136, %v172
  %v209 = vmin.f32 %v137, %v173
  %v210 = vmin.f32 %v138, %v174
  %v211 = vmin.f32 %v139, %v175
  %v212 = vmin.f32 %v140, %v176
  %v213 = vmin.f32 %v141, %v177
  %v214 = vmin.f32 %v142, %v178
  %v215 = vmin.f32 %v143, %v179
  %v216 = vmin.f32 %v144, %v180
  %v217 = vmin.f32 %v145, %v181
  %v218 = vmin.f32 %v146, %v182
  %v219 = vmin.f32 %v147, %v183
  %v220 = vmin.f32 %v148, %v184
  %v221 = vmin.f32 %v149, %v185
  %v222 = vmin.f32 %v150, %v186
  %v223 = vmin.f32 %v151, %v187
  %v224 = vmin.f32 %v152, %v188
  %v225 = vmin.f32 %v153, %v189
  %v226 = vmin.f32 %v154, %v190
  %v227 = vmin.f32 %v155, %v191
  %228 = vst.msk [vmem:[#allocation3] sm:$0xff] %vm8, %v192
  %229 = vst.msk [vmem:[#allocation3 + $0x8] sm:$0xff] %vm8, %v193
  %230 = vst.msk [vmem:[#allocation3 + $0x10] sm:$0xff] %vm8, %v194
  %231 = vst.msk [vmem:[#allocation3 + $0x18] sm:$0x1] %vm12, %v195
  %232 = vst.msk [vmem:[#allocation3 + $0x20] sm:$0xff] %vm8, %v196
  %233 = vst.msk [vmem:[#allocation3 + $0x28] sm:$0xff] %vm8, %v197
  %234 = vst.msk [vmem:[#allocation3 + $0x30] sm:$0xff] %vm8, %v198
  %235 = vst.msk [vmem:[#allocation3 + $0x38] sm:$0x1] %vm12, %v199
  %236 = vst.msk [vmem:[#allocation3 + $0x40] sm:$0xff] %vm8, %v200
  %237 = vst.msk [vmem:[#allocation3 + $0x48] sm:$0xff] %vm8, %v201
  %238 = vst.msk [vmem:[#allocation3 + $0x50] sm:$0xff] %vm8, %v202
  %239 = vst.msk [vmem:[#allocation3 + $0x58] sm:$0x1] %vm12, %v203
  %240 = vst.msk [vmem:[#allocation3 + $0x60] sm:$0xff] %vm8, %v204
  %241 = vst.msk [vmem:[#allocation3 + $0x68] sm:$0xff] %vm8, %v205
  %242 = vst.msk [vmem:[#allocation3 + $0x70] sm:$0xff] %vm8, %v206
  %243 = vst.msk [vmem:[#allocation3 + $0x78] sm:$0x1] %vm12, %v207
  %244 = vst.msk [vmem:[#allocation3 + $0x80] sm:$0xff] %vm8, %v208
  %245 = vst.msk [vmem:[#allocation3 + $0x88] sm:$0xff] %vm8, %v209
  %246 = vst.msk [vmem:[#allocation3 + $0x90] sm:$0xff] %vm8, %v210
  %247 = vst.msk [vmem:[#allocation3 + $0x98] sm:$0x1] %vm12, %v211
  %248 = vst.msk [vmem:[#allocation3 + $0xa0] sm:$0xff] %vm8, %v212
  %249 = vst.msk [vmem:[#allocation3 + $0xa8] sm:$0xff] %vm8, %v213
  %250 = vst.msk [vmem:[#allocation3 + $0xb0] sm:$0xff] %vm8, %v214
  %251 = vst.msk [vmem:[#allocation3 + $0xb8] sm:$0x1] %vm12, %v215
  %252 = vst.msk [vmem:[#allocation3 + $0xc0] sm:$0xff] %vm8, %v216
  %253 = vst.msk [vmem:[#allocation3 + $0xc8] sm:$0xff] %vm8, %v217
  %254 = vst.msk [vmem:[#allocation3 + $0xd0] sm:$0xff] %vm8, %v218
  %255 = vst.msk [vmem:[#allocation3 + $0xd8] sm:$0x1] %vm12, %v219
  %256 = vst.msk [vmem:[#allocation3 + $0xe0] sm:$0xff] %vm8, %v220
  %257 = vst.msk [vmem:[#allocation3 + $0xe8] sm:$0xff] %vm8, %v221
  %258 = vst.msk [vmem:[#allocation3 + $0xf0] sm:$0xff] %vm8, %v222
  %259 = vst.msk [vmem:[#allocation3 + $0xf8] sm:$0x1] %vm12, %v223
  %260 = vst.msk [vmem:[#allocation3 + $0x100] sm:$0xff] %vm8, %v224
  %261 = vst.msk [vmem:[#allocation3 + $0x108] sm:$0xff] %vm8, %v225
  %262 = vst.msk [vmem:[#allocation3 + $0x110] sm:$0xff] %vm8, %v226
  %263 = vst.msk [vmem:[#allocation3 + $0x118] sm:$0x1] %vm12, %v227
  %s264 = scalar_lea.vmem [#allocation3], 7
  %v265 = vld [vmem:[%s264] ss:$2 sm:$0xff]
  %s266 = scalar_lea.vmem [#allocation3], 23
  %v267 = vld [vmem:[%s266] ss:$2 sm:$0x1]
  %s268 = scalar_lea.vmem [#allocation3], 39
  %v269 = vld [vmem:[%s268] ss:$2 sm:$0xff]
  %s270 = scalar_lea.vmem [#allocation3], 55
  %v271 = vld [vmem:[%s270] ss:$2 sm:$0x1]
  %s272 = scalar_lea.vmem [#allocation3], 71
  %v273 = vld [vmem:[%s272] ss:$2 sm:$0xff]
  %s274 = scalar_lea.vmem [#allocation3], 87
  %v275 = vld [vmem:[%s274] ss:$2 sm:$0x1]
  %s276 = scalar_lea.vmem [#allocation3], 103
  %v277 = vld [vmem:[%s276] ss:$2 sm:$0xff]
  %s278 = scalar_lea.vmem [#allocation3], 119
  %v279 = vld [vmem:[%s278] ss:$2 sm:$0x1]
  %s280 = scalar_lea.vmem [#allocation3], 135
  %v281 = vld [vmem:[%s280] ss:$2 sm:$0xff]
  %s282 = scalar_lea.vmem [#allocation3], 151
  %v283 = vld [vmem:[%s282] ss:$2 sm:$0x1]
  %s284 = scalar_lea.vmem [#allocation3], 167
  %v285 = vld [vmem:[%s284] ss:$2 sm:$0xff]
  %s286 = scalar_lea.vmem [#allocation3], 183
  %v287 = vld [vmem:[%s286] ss:$2 sm:$0x1]
  %s288 = scalar_lea.vmem [#allocation3], 199
  %v289 = vld [vmem:[%s288] ss:$2 sm:$0xff]
  %s290 = scalar_lea.vmem [#allocation3], 215
  %v291 = vld [vmem:[%s290] ss:$2 sm:$0x1]
  %s292 = scalar_lea.vmem [#allocation3], 231
  %v293 = vld [vmem:[%s292] ss:$2 sm:$0xff]
  %s294 = scalar_lea.vmem [#allocation3], 247
  %v295 = vld [vmem:[%s294] ss:$2 sm:$0x1]
  %s296 = scalar_lea.vmem [#allocation3], 263
  %v297 = vld [vmem:[%s296] ss:$2 sm:$0xff]
  %s298 = scalar_lea.vmem [#allocation3], 279
  %v299 = vld [vmem:[%s298] ss:$2 sm:$0x1]
  %s300 = scalar_lea.vmem [#allocation3], 8
  %v301 = vld [vmem:[%s300] ss:$2 sm:$0xff]
  %s302 = scalar_lea.vmem [#allocation3], 24
  %v303 = vld [vmem:[%s302] ss:$2 sm:$0x1]
  %s304 = scalar_lea.vmem [#allocation3], 40
  %v305 = vld [vmem:[%s304] ss:$2 sm:$0xff]
  %s306 = scalar_lea.vmem [#allocation3], 56
  %v307 = vld [vmem:[%s306] ss:$2 sm:$0x1]
  %s308 = scalar_lea.vmem [#allocation3], 72
  %v309 = vld [vmem:[%s308] ss:$2 sm:$0xff]
  %s310 = scalar_lea.vmem [#allocation3], 88
  %v311 = vld [vmem:[%s310] ss:$2 sm:$0x1]
  %s312 = scalar_lea.vmem [#allocation3], 104
  %v313 = vld [vmem:[%s312] ss:$2 sm:$0xff]
  %s314 = scalar_lea.vmem [#allocation3], 120
  %v315 = vld [vmem:[%s314] ss:$2 sm:$0x1]
  %s316 = scalar_lea.vmem [#allocation3], 136
  %v317 = vld [vmem:[%s316] ss:$2 sm:$0xff]
  %s318 = scalar_lea.vmem [#allocation3], 152
  %v319 = vld [vmem:[%s318] ss:$2 sm:$0x1]
  %s320 = scalar_lea.vmem [#allocation3], 168
  %v321 = vld [vmem:[%s320] ss:$2 sm:$0xff]
  %s322 = scalar_lea.vmem [#allocation3], 184
  %v323 = vld [vmem:[%s322] ss:$2 sm:$0x1]
  %s324 = scalar_lea.vmem [#allocation3], 200
  %v325 = vld [vmem:[%s324] ss:$2 sm:$0xff]
  %s326 = scalar_lea.vmem [#allocation3], 216
  %v327 = vld [vmem:[%s326] ss:$2 sm:$0x1]
  %s328 = scalar_lea.vmem [#allocation3], 232
  %v329 = vld [vmem:[%s328] ss:$2 sm:$0xff]
  %s330 = scalar_lea.vmem [#allocation3], 248
  %v331 = vld [vmem:[%s330] ss:$2 sm:$0x1]
  %s332 = scalar_lea.vmem [#allocation3], 264
  %v333 = vld [vmem:[%s332] ss:$2 sm:$0xff]
  %s334 = scalar_lea.vmem [#allocation3], 280
  %v335 = vld [vmem:[%s334] ss:$2 sm:$0x1]
  %v336 = vmin.f32 %v265, %v301
  %v337 = vmin.f32 %v267, %v303
  %v338 = vmin.f32 %v269, %v305
  %v339 = vmin.f32 %v271, %v307
  %v340 = vmin.f32 %v273, %v309
  %v341 = vmin.f32 %v275, %v311
  %v342 = vmin.f32 %v277, %v313
  %v343 = vmin.f32 %v279, %v315
  %v344 = vmin.f32 %v281, %v317
  %v345 = vmin.f32 %v283, %v319
  %v346 = vmin.f32 %v285, %v321
  %v347 = vmin.f32 %v287, %v323
  %v348 = vmin.f32 %v289, %v325
  %v349 = vmin.f32 %v291, %v327
  %v350 = vmin.f32 %v293, %v329
  %v351 = vmin.f32 %v295, %v331
  %v352 = vmin.f32 %v297, %v333
  %v353 = vmin.f32 %v299, %v335
  %354 = vst.msk [vmem:[%s1] sm:$0xff] %vm8, %v336
  %355 = vst.msk [vmem:[%s1 + $0x8] sm:$0x1] %vm12, %v337
  %356 = vst.msk [vmem:[%s1 + $0x10] sm:$0xff] %vm8, %v338
  %357 = vst.msk [vmem:[%s1 + $0x18] sm:$0x1] %vm12, %v339
  %358 = vst.msk [vmem:[%s1 + $0x20] sm:$0xff] %vm8, %v340
  %359 = vst.msk [vmem:[%s1 + $0x28] sm:$0x1] %vm12, %v341
  %360 = vst.msk [vmem:[%s1 + $0x30] sm:$0xff] %vm8, %v342
  %361 = vst.msk [vmem:[%s1 + $0x38] sm:$0x1] %vm12, %v343
  %362 = vst.msk [vmem:[%s1 + $0x40] sm:$0xff] %vm8, %v344
  %363 = vst.msk [vmem:[%s1 + $0x48] sm:$0x1] %vm12, %v345
  %364 = vst.msk [vmem:[%s1 + $0x50] sm:$0xff] %vm8, %v346
  %365 = vst.msk [vmem:[%s1 + $0x58] sm:$0x1] %vm12, %v347
  %366 = vst.msk [vmem:[%s1 + $0x60] sm:$0xff] %vm8, %v348
  %367 = vst.msk [vmem:[%s1 + $0x68] sm:$0x1] %vm12, %v349
  %368 = vst.msk [vmem:[%s1 + $0x70] sm:$0xff] %vm8, %v350
  %369 = vst.msk [vmem:[%s1 + $0x78] sm:$0x1] %vm12, %v351
  %370 = vst.msk [vmem:[%s1 + $0x80] sm:$0xff] %vm8, %v352
  %371 = vst.msk [vmem:[%s1 + $0x88] sm:$0x1] %vm12, %v353
  // Predicated region
  $region6: #{tpu_custom_call.1} parent=0 // pred_check
    _
  $region7: #{tpu_custom_call.1} parent=0 // pred_check_branch
    %373 = sbr.rel (0) target = $region9
  $region8: #{tpu_custom_call.1} parent=0 // pred_region
    _
  $region9: #{tpu_custom_call.1} parent=0 // pred_fallthru
    _
  // Predicated region
  $region10: #{tpu_custom_call.1} parent=0 // pred_check
    _
  $region11: #{tpu_custom_call.1} parent=0 // pred_check_branch
    %375 = sbr.rel (0) target = $region13
  $region12: #{tpu_custom_call.1} parent=0 // pred_region
    _
  $region13: #{tpu_custom_call.1} parent=0 // pred_fallthru
    _

</llo_original>
